<compile_context>
chip_gen: v5e
topology: v5e:2x2
jax: 0.10.0
libtpu: 0.0.40
codegen_flags: <defaults>
</compile_context>

<pallas_src>
import functools
import math

import jax
import jax.numpy as jnp
from jax.experimental import pallas as pl
from jax.experimental.pallas import tpu as pltpu

NUM_LAYERS = 10  # 10 Linear layers, ReLU between all but the last.


def _round_up(v, m):
    return ((v + m - 1) // m) * m


def _layer_layout(nlev):
    """Static per-layer padded dims / row offsets of the ragged weight slab."""
    n = nlev - 2
    dims = [1 * n, 3 * n, 6 * n, 9 * n, 9 * n, 9 * n, 9 * n, 9 * n, 6 * n, 3 * n, 1 * n]
    rpad = lambda v: max(128, _round_up(v, 128))
    # Effective K width per layer: layer 0 is row-shifted (fuses the X[1:-1] slice)
    # so it spans the full nlev input lanes.
    k_eff = [nlev] + dims[1:NUM_LAYERS]
    # Effective N width per layer: last layer is column-shifted (zero output edges)
    # so it spans nlev output lanes.
    n_eff = dims[1:NUM_LAYERS] + [nlev]
    k_pads = [rpad(v) for v in k_eff]
    n_pads = [rpad(v) for v in n_eff]
    row_offs, off = [], 0
    for k in k_pads:
        row_offs.append(off)
        off += k
    k_total = off
    n_col = max(n_pads)
    return dims, k_pads, n_pads, row_offs, k_total, n_col


def _mlp_kernel(x_ref, w_ref, b_ref, out_ref, *, row_offs, k_pads, n_pads):
    """x_ref: (TB, k_pads[0]) f32; w_ref: (K_total, n_col) bf16;
    b_ref: (NUM_LAYERS, n_col) f32; out_ref: (TB, n_pads[-1]) f32.

    Pure 10x (bf16 matmul + f32 bias + ReLU) chain; the edge handling of the
    original module is fused into the static weight packing.
    """
    num_layers = len(k_pads)
    h = x_ref[...]                                              # f32 (TB, k0)
    for i in range(num_layers):                                 # unrolled at trace time
        w = w_ref[pl.ds(row_offs[i], k_pads[i]), pl.ds(0, n_pads[i])]   # bf16 (k_i, n_i)
        b = b_ref[pl.ds(i, 1), pl.ds(0, n_pads[i])]                     # f32  (1, n_i)
        h = jnp.dot(h.astype(w_ref.dtype), w,
                    preferred_element_type=jnp.float32)          # MXU bf16, f32 acc
        h = h + b                                                # VPU, f32
        if i < num_layers - 1:
            h = jnp.maximum(h, 0.0)                              # VPU ReLU
    out_ref[...] = h.astype(out_ref.dtype)                       # lane-dense store


def make_params(nlev, key, w_dtype=jnp.bfloat16):
    """Packed params mimicking nn.Linear default init U[-1/sqrt(fan_in), +bound).

    Weights are stored as (in, out) == PyTorch weight.T, zero-padded into one
    ragged-by-rows (K_total, n_col) bf16 slab; biases into (NUM_LAYERS, n_col) f32.
    Layer 0 is shifted by one ROW (fuses the X[1:-1] slice); the last layer is
    shifted by one COLUMN (fuses the zero edge padding of the output).
    Also returns the raw per-layer (w, b) list for the pure-JAX reference.
    """
    dims, k_pads, n_pads, row_offs, k_total, n_col = _layer_layout(nlev)
    w_packed = jnp.zeros((k_total, n_col), w_dtype)
    b_packed = jnp.zeros((NUM_LAYERS, n_col), jnp.float32)
    raw = []
    for i in range(NUM_LAYERS):
        fan_in, fan_out = dims[i], dims[i + 1]
        key, kw, kb = jax.random.split(key, 3)
        bound = 1.0 / math.sqrt(fan_in)
        w = jax.random.uniform(kw, (fan_in, fan_out), jnp.float32, -bound, bound)
        b = jax.random.uniform(kb, (fan_out,), jnp.float32, -bound, bound)
        raw.append((w, b))
        r0 = 1 if i == 0 else 0                  # row shift -> X[1:-1] slice
        c0 = 1 if i == NUM_LAYERS - 1 else 0     # col shift -> zero output edges
        w_packed = w_packed.at[row_offs[i] + r0: row_offs[i] + r0 + fan_in,
                               c0: c0 + fan_out].set(w.astype(w_dtype))
        b_packed = b_packed.at[i, c0: c0 + fan_out].set(b)
    return w_packed, b_packed, raw


@jax.jit
def fully_connected_forward(x, w_packed, b_packed):
    """Eval-mode forward.  x: (nlev,) or (B, nlev) -> same leading shape, (.., nlev)."""
    # TODO(synk): scaler_X / scaler_Y transforms are None in this config and omitted.
    squeeze = x.ndim == 1
    if squeeze:
        x = x[None, :]
    batch, nlev = x.shape
    dims, k_pads, n_pads, row_offs, k_total, n_col = _layer_layout(nlev)
    in_pad, out_pad = k_pads[0], n_pads[-1]
    num_layers = NUM_LAYERS

    # Batch tiling: 128 rows by default; 256 only when there are enough rows to
    # fill the 256-wide MXU (v6e/v7x) while still keeping >= 2 parallel grid
    # blocks (so both v7x TensorCores get work).
    b_pad = max(8, _round_up(batch, 8))
    tile_b = 256 if b_pad >= 512 else min(b_pad, 128)
    b_pad = _round_up(b_pad, tile_b)

    # Single glue op: zero-pad to a lane-dense (b_pad, in_pad) slab (in_pad is the
    # layer-0 K width = round_up(nlev, 128), not the max hidden width).
    x_pad = jnp.pad(x.astype(jnp.float32), ((0, b_pad - batch), (0, in_pad - nlev)))

    param_bytes = (w_packed.size * w_packed.dtype.itemsize
                   + b_packed.size * b_packed.dtype.itemsize)
    # 2x params (default double-buffering) + double-buffered x/out tiles + live h.
    vmem_limit = (2 * param_bytes
                  + 2 * tile_b * (in_pad + out_pad) * 4
                  + 2 * tile_b * n_col * 4
                  + (4 << 20))
    vmem_limit = int(min(max(vmem_limit, 8 << 20), 48 << 20))  # stay well inside v7x 64 MiB/TC

    flops = 2 * batch * sum(dims[i] * dims[i + 1] for i in range(num_layers))
    bytes_accessed = (param_bytes
                      + b_pad * in_pad * 4           # input slab
                      + b_pad * out_pad * 4)         # output slab
    cost = pl.CostEstimate(flops=flops, transcendentals=0,
                           bytes_accessed=bytes_accessed)

    kernel = functools.partial(_mlp_kernel,
                               row_offs=tuple(row_offs),
                               k_pads=tuple(k_pads),
                               n_pads=tuple(n_pads))

    out = pl.pallas_call(
        kernel,
        out_shape=jax.ShapeDtypeStruct((b_pad, out_pad), jnp.float32),
        grid=(b_pad // tile_b,),
        in_specs=[
            pl.BlockSpec((tile_b, in_pad), lambda i: (i, 0)),
            pl.BlockSpec((k_total, n_col), lambda i: (0, 0)),      # VMEM-resident weights
            pl.BlockSpec((num_layers, n_col), lambda i: (0, 0)),   # VMEM-resident biases
        ],
        out_specs=pl.BlockSpec((tile_b, out_pad), lambda i: (i, 0)),
        compiler_params=pltpu.CompilerParams(
            dimension_semantics=("parallel",),
            vmem_limit_bytes=vmem_limit,
        ),
        cost_estimate=cost,
    )(x_pad, w_packed, b_packed)

    y = out[:batch, :nlev]
    return y[0] if squeeze else y


def _reference_forward(x, raw_layers):
    """Pure-JAX emulation of the eval forward with bf16 operands / f32 accumulate."""
    h = x[1:-1].astype(jnp.float32)[None, :]
    for i, (w, b) in enumerate(raw_layers):
        hb = h.astype(jnp.bfloat16).astype(jnp.float32)
        wb = w.astype(jnp.bfloat16).astype(jnp.float32)
        h = jnp.dot(hb, wb, precision=jax.lax.Precision.HIGHEST) + b[None, :]
        if i < len(raw_layers) - 1:
            h = jnp.maximum(h, 0.0)
    zero = jnp.zeros((1,), jnp.float32)
    return jnp.concatenate([zero, h[0], zero])


if __name__ == "__main__":
    nlev = 10  # small: interior n = 8, hidden widths 24/48/72 (padded to 128 lanes)
    key = jax.random.PRNGKey(0)
    key, kx, kxb = jax.random.split(key, 3)

    w_packed, b_packed, raw_layers = make_params(nlev, key)

    # Single-profile eval path (matches PyTorch eval-mode forward).
    x = jax.random.normal(kx, (nlev,), dtype=jnp.float32)
    out = jax.block_until_ready(fully_connected_forward(x, w_packed, b_packed))
    assert out.shape == (nlev,), out.shape
    assert bool(out[0] == 0.0) and bool(out[-1] == 0.0)
    ref = _reference_forward(x, raw_layers)
    assert jnp.allclose(out, ref, rtol=1e-3, atol=1e-3), (out, ref)

    # Small batch to exercise the tiled "parallel" grid path.
    xb = jax.random.normal(kxb, (4, nlev), dtype=jnp.float32)
    outb = jax.block_until_ready(fully_connected_forward(xb, w_packed, b_packed))
    refb = jnp.stack([_reference_forward(xb[i], raw_layers) for i in range(xb.shape[0])])
    assert outb.shape == (4, nlev), outb.shape
    assert jnp.allclose(outb, refb, rtol=1e-3, atol=1e-3), (outb, refb)

    print("KERNEL_OK")
</pallas_src>

<mosaic_0001>
module attributes {stable_mosaic.version = 11 : i64} {
  func.func @_mlp_kernel(%arg0: i32, %arg1: memref<8x128xf32, #tpu.memory_space<vmem>>, %arg2: memref<1280x128xbf16, #tpu.memory_space<vmem>>, %arg3: memref<10x128xf32, #tpu.memory_space<vmem>>, %arg4: memref<8x128xf32, #tpu.memory_space<vmem>>) attributes {dimension_semantics = [#tpu.dimension_semantics<parallel>], iteration_bounds = array<i64: 1>, scalar_prefetch = 0 : i64, scratch_operands = 0 : i64, tpu.core_type = #tpu.core_type<tc>, window_params = [{transform_indices = @transform_0, window_bounds = array<i64: 8, 128>}, {pipeline_mode = #tpu.pipeline_mode<synchronous>, transform_indices = @transform_1, window_bounds = array<i64: 1280, 128>}, {pipeline_mode = #tpu.pipeline_mode<synchronous>, transform_indices = @transform_2, window_bounds = array<i64: 10, 128>}, {transform_indices = @transform_3, window_bounds = array<i64: 8, 128>}]} {
    %c0 = arith.constant 0 : index
    %c0_0 = arith.constant 0 : index
    %0 = vector.load %arg1[%c0, %c0_0] : memref<8x128xf32, #tpu.memory_space<vmem>>, vector<8x128xf32>
    %c0_1 = arith.constant 0 : index
    %c0_2 = arith.constant 0 : index
    %1 = vector.load %arg2[%c0_1, %c0_2] : memref<1280x128xbf16, #tpu.memory_space<vmem>>, vector<128x128xbf16>
    %c0_3 = arith.constant 0 : index
    %c0_4 = arith.constant 0 : index
    %2 = vector.load %arg3[%c0_3, %c0_4] : memref<10x128xf32, #tpu.memory_space<vmem>>, vector<1x128xf32>
    %3 = arith.truncf %0 : vector<8x128xf32> to vector<8x128xbf16>
    %cst = arith.constant dense<0.000000e+00> : vector<8x128xf32>
    %4 = tpu.matmul %3, %1, %cst {dimension_numbers = #tpu.dot_dimension_numbers<[1], [0], [0], [1], [0, 0, 1, 1], [], []>} : vector<8x128xbf16>, vector<128x128xbf16>, vector<8x128xf32> -> vector<8x128xf32>
    %5 = vector.broadcast %2 : vector<1x128xf32> to vector<8x128xf32>
    %6 = arith.addf %4, %5 : vector<8x128xf32>
    %cst_5 = arith.constant 0.000000e+00 : f32
    %7 = vector.broadcast %cst_5 : f32 to vector<8x128xf32>
    %8 = arith.maximumf %6, %7 : vector<8x128xf32>
    %c128 = arith.constant 128 : index
    %c0_6 = arith.constant 0 : index
    %9 = vector.load %arg2[%c128, %c0_6] : memref<1280x128xbf16, #tpu.memory_space<vmem>>, vector<128x128xbf16>
    %c1 = arith.constant 1 : index
    %c0_7 = arith.constant 0 : index
    %10 = vector.load %arg3[%c1, %c0_7] : memref<10x128xf32, #tpu.memory_space<vmem>>, vector<1x128xf32>
    %11 = arith.truncf %8 : vector<8x128xf32> to vector<8x128xbf16>
    %cst_8 = arith.constant dense<0.000000e+00> : vector<8x128xf32>
    %12 = tpu.matmul %11, %9, %cst_8 {dimension_numbers = #tpu.dot_dimension_numbers<[1], [0], [0], [1], [0, 0, 1, 1], [], []>} : vector<8x128xbf16>, vector<128x128xbf16>, vector<8x128xf32> -> vector<8x128xf32>
    %13 = vector.broadcast %10 : vector<1x128xf32> to vector<8x128xf32>
    %14 = arith.addf %12, %13 : vector<8x128xf32>
    %cst_9 = arith.constant 0.000000e+00 : f32
    %15 = vector.broadcast %cst_9 : f32 to vector<8x128xf32>
    %16 = arith.maximumf %14, %15 : vector<8x128xf32>
    %c256 = arith.constant 256 : index
    %c0_10 = arith.constant 0 : index
    %17 = vector.load %arg2[%c256, %c0_10] : memref<1280x128xbf16, #tpu.memory_space<vmem>>, vector<128x128xbf16>
    %c2 = arith.constant 2 : index
    %c0_11 = arith.constant 0 : index
    %18 = vector.load %arg3[%c2, %c0_11] : memref<10x128xf32, #tpu.memory_space<vmem>>, vector<1x128xf32>
    %19 = arith.truncf %16 : vector<8x128xf32> to vector<8x128xbf16>
    %cst_12 = arith.constant dense<0.000000e+00> : vector<8x128xf32>
    %20 = tpu.matmul %19, %17, %cst_12 {dimension_numbers = #tpu.dot_dimension_numbers<[1], [0], [0], [1], [0, 0, 1, 1], [], []>} : vector<8x128xbf16>, vector<128x128xbf16>, vector<8x128xf32> -> vector<8x128xf32>
    %21 = vector.broadcast %18 : vector<1x128xf32> to vector<8x128xf32>
    %22 = arith.addf %20, %21 : vector<8x128xf32>
    %cst_13 = arith.constant 0.000000e+00 : f32
    %23 = vector.broadcast %cst_13 : f32 to vector<8x128xf32>
    %24 = arith.maximumf %22, %23 : vector<8x128xf32>
    %c384 = arith.constant 384 : index
    %c0_14 = arith.constant 0 : index
    %25 = vector.load %arg2[%c384, %c0_14] : memref<1280x128xbf16, #tpu.memory_space<vmem>>, vector<128x128xbf16>
    %c3 = arith.constant 3 : index
    %c0_15 = arith.constant 0 : index
    %26 = vector.load %arg3[%c3, %c0_15] : memref<10x128xf32, #tpu.memory_space<vmem>>, vector<1x128xf32>
    %27 = arith.truncf %24 : vector<8x128xf32> to vector<8x128xbf16>
    %cst_16 = arith.constant dense<0.000000e+00> : vector<8x128xf32>
    %28 = tpu.matmul %27, %25, %cst_16 {dimension_numbers = #tpu.dot_dimension_numbers<[1], [0], [0], [1], [0, 0, 1, 1], [], []>} : vector<8x128xbf16>, vector<128x128xbf16>, vector<8x128xf32> -> vector<8x128xf32>
    %29 = vector.broadcast %26 : vector<1x128xf32> to vector<8x128xf32>
    %30 = arith.addf %28, %29 : vector<8x128xf32>
    %cst_17 = arith.constant 0.000000e+00 : f32
    %31 = vector.broadcast %cst_17 : f32 to vector<8x128xf32>
    %32 = arith.maximumf %30, %31 : vector<8x128xf32>
    %c512 = arith.constant 512 : index
    %c0_18 = arith.constant 0 : index
    %33 = vector.load %arg2[%c512, %c0_18] : memref<1280x128xbf16, #tpu.memory_space<vmem>>, vector<128x128xbf16>
    %c4 = arith.constant 4 : index
    %c0_19 = arith.constant 0 : index
    %34 = vector.load %arg3[%c4, %c0_19] : memref<10x128xf32, #tpu.memory_space<vmem>>, vector<1x128xf32>
    %35 = arith.truncf %32 : vector<8x128xf32> to vector<8x128xbf16>
    %cst_20 = arith.constant dense<0.000000e+00> : vector<8x128xf32>
    %36 = tpu.matmul %35, %33, %cst_20 {dimension_numbers = #tpu.dot_dimension_numbers<[1], [0], [0], [1], [0, 0, 1, 1], [], []>} : vector<8x128xbf16>, vector<128x128xbf16>, vector<8x128xf32> -> vector<8x128xf32>
    %37 = vector.broadcast %34 : vector<1x128xf32> to vector<8x128xf32>
    %38 = arith.addf %36, %37 : vector<8x128xf32>
    %cst_21 = arith.constant 0.000000e+00 : f32
    %39 = vector.broadcast %cst_21 : f32 to vector<8x128xf32>
    %40 = arith.maximumf %38, %39 : vector<8x128xf32>
    %c640 = arith.constant 640 : index
    %c0_22 = arith.constant 0 : index
    %41 = vector.load %arg2[%c640, %c0_22] : memref<1280x128xbf16, #tpu.memory_space<vmem>>, vector<128x128xbf16>
    %c5 = arith.constant 5 : index
    %c0_23 = arith.constant 0 : index
    %42 = vector.load %arg3[%c5, %c0_23] : memref<10x128xf32, #tpu.memory_space<vmem>>, vector<1x128xf32>
    %43 = arith.truncf %40 : vector<8x128xf32> to vector<8x128xbf16>
    %cst_24 = arith.constant dense<0.000000e+00> : vector<8x128xf32>
    %44 = tpu.matmul %43, %41, %cst_24 {dimension_numbers = #tpu.dot_dimension_numbers<[1], [0], [0], [1], [0, 0, 1, 1], [], []>} : vector<8x128xbf16>, vector<128x128xbf16>, vector<8x128xf32> -> vector<8x128xf32>
    %45 = vector.broadcast %42 : vector<1x128xf32> to vector<8x128xf32>
    %46 = arith.addf %44, %45 : vector<8x128xf32>
    %cst_25 = arith.constant 0.000000e+00 : f32
    %47 = vector.broadcast %cst_25 : f32 to vector<8x128xf32>
    %48 = arith.maximumf %46, %47 : vector<8x128xf32>
    %c768 = arith.constant 768 : index
    %c0_26 = arith.constant 0 : index
    %49 = vector.load %arg2[%c768, %c0_26] : memref<1280x128xbf16, #tpu.memory_space<vmem>>, vector<128x128xbf16>
    %c6 = arith.constant 6 : index
    %c0_27 = arith.constant 0 : index
    %50 = vector.load %arg3[%c6, %c0_27] : memref<10x128xf32, #tpu.memory_space<vmem>>, vector<1x128xf32>
    %51 = arith.truncf %48 : vector<8x128xf32> to vector<8x128xbf16>
    %cst_28 = arith.constant dense<0.000000e+00> : vector<8x128xf32>
    %52 = tpu.matmul %51, %49, %cst_28 {dimension_numbers = #tpu.dot_dimension_numbers<[1], [0], [0], [1], [0, 0, 1, 1], [], []>} : vector<8x128xbf16>, vector<128x128xbf16>, vector<8x128xf32> -> vector<8x128xf32>
    %53 = vector.broadcast %50 : vector<1x128xf32> to vector<8x128xf32>
    %54 = arith.addf %52, %53 : vector<8x128xf32>
    %cst_29 = arith.constant 0.000000e+00 : f32
    %55 = vector.broadcast %cst_29 : f32 to vector<8x128xf32>
    %56 = arith.maximumf %54, %55 : vector<8x128xf32>
    %c896 = arith.constant 896 : index
    %c0_30 = arith.constant 0 : index
    %57 = vector.load %arg2[%c896, %c0_30] : memref<1280x128xbf16, #tpu.memory_space<vmem>>, vector<128x128xbf16>
    %c7 = arith.constant 7 : index
    %c0_31 = arith.constant 0 : index
    %58 = vector.load %arg3[%c7, %c0_31] : memref<10x128xf32, #tpu.memory_space<vmem>>, vector<1x128xf32>
    %59 = arith.truncf %56 : vector<8x128xf32> to vector<8x128xbf16>
    %cst_32 = arith.constant dense<0.000000e+00> : vector<8x128xf32>
    %60 = tpu.matmul %59, %57, %cst_32 {dimension_numbers = #tpu.dot_dimension_numbers<[1], [0], [0], [1], [0, 0, 1, 1], [], []>} : vector<8x128xbf16>, vector<128x128xbf16>, vector<8x128xf32> -> vector<8x128xf32>
    %61 = vector.broadcast %58 : vector<1x128xf32> to vector<8x128xf32>
    %62 = arith.addf %60, %61 : vector<8x128xf32>
    %cst_33 = arith.constant 0.000000e+00 : f32
    %63 = vector.broadcast %cst_33 : f32 to vector<8x128xf32>
    %64 = arith.maximumf %62, %63 : vector<8x128xf32>
    %c1024 = arith.constant 1024 : index
    %c0_34 = arith.constant 0 : index
    %65 = vector.load %arg2[%c1024, %c0_34] : memref<1280x128xbf16, #tpu.memory_space<vmem>>, vector<128x128xbf16>
    %c8 = arith.constant 8 : index
    %c0_35 = arith.constant 0 : index
    %66 = vector.load %arg3[%c8, %c0_35] : memref<10x128xf32, #tpu.memory_space<vmem>>, vector<1x128xf32>
    %67 = arith.truncf %64 : vector<8x128xf32> to vector<8x128xbf16>
    %cst_36 = arith.constant dense<0.000000e+00> : vector<8x128xf32>
    %68 = tpu.matmul %67, %65, %cst_36 {dimension_numbers = #tpu.dot_dimension_numbers<[1], [0], [0], [1], [0, 0, 1, 1], [], []>} : vector<8x128xbf16>, vector<128x128xbf16>, vector<8x128xf32> -> vector<8x128xf32>
    %69 = vector.broadcast %66 : vector<1x128xf32> to vector<8x128xf32>
    %70 = arith.addf %68, %69 : vector<8x128xf32>
    %cst_37 = arith.constant 0.000000e+00 : f32
    %71 = vector.broadcast %cst_37 : f32 to vector<8x128xf32>
    %72 = arith.maximumf %70, %71 : vector<8x128xf32>
    %c1152 = arith.constant 1152 : index
    %c0_38 = arith.constant 0 : index
    %73 = vector.load %arg2[%c1152, %c0_38] : memref<1280x128xbf16, #tpu.memory_space<vmem>>, vector<128x128xbf16>
    %c9 = arith.constant 9 : index
    %c0_39 = arith.constant 0 : index
    %74 = vector.load %arg3[%c9, %c0_39] : memref<10x128xf32, #tpu.memory_space<vmem>>, vector<1x128xf32>
    %75 = arith.truncf %72 : vector<8x128xf32> to vector<8x128xbf16>
    %cst_40 = arith.constant dense<0.000000e+00> : vector<8x128xf32>
    %76 = tpu.matmul %75, %73, %cst_40 {dimension_numbers = #tpu.dot_dimension_numbers<[1], [0], [0], [1], [0, 0, 1, 1], [], []>} : vector<8x128xbf16>, vector<128x128xbf16>, vector<8x128xf32> -> vector<8x128xf32>
    %77 = vector.broadcast %74 : vector<1x128xf32> to vector<8x128xf32>
    %78 = arith.addf %76, %77 : vector<8x128xf32>
    %c0_41 = arith.constant 0 : index
    %c0_42 = arith.constant 0 : index
    %79 = vector.load %arg4[%c0_41, %c0_42] : memref<8x128xf32, #tpu.memory_space<vmem>>, vector<8x128xf32>
    tpu.vector_store %arg4[%c0_41, %c0_42], %78 {strides = array<i32>} : memref<8x128xf32, #tpu.memory_space<vmem>>, vector<8x128xf32>,
    return
  }
  func.func @transform_0(%arg0: i32) -> (i32, i32) {
    %c0_i32 = arith.constant 0 : i32
    %c0_i32_0 = arith.constant 0 : i32
    return %arg0, %c0_i32 : i32, i32
  }
  func.func @transform_1(%arg0: i32) -> (i32, i32) {
    %c0_i32 = arith.constant 0 : i32
    %c0_i32_0 = arith.constant 0 : i32
    %c0_i32_1 = arith.constant 0 : i32
    return %c0_i32, %c0_i32_0 : i32, i32
  }
  func.func @transform_2(%arg0: i32) -> (i32, i32) {
    %c0_i32 = arith.constant 0 : i32
    %c0_i32_0 = arith.constant 0 : i32
    %c0_i32_1 = arith.constant 0 : i32
    return %c0_i32, %c0_i32_0 : i32, i32
  }
  func.func @transform_3(%arg0: i32) -> (i32, i32) {
    %c0_i32 = arith.constant 0 : i32
    %c0_i32_0 = arith.constant 0 : i32
    return %arg0, %c0_i32 : i32, i32
  }
}

</mosaic_0001>

<llo_original>
// kernel: fully_connected_forward.1
$region0: #{fully_connected_forward.1}
  #allocation0 [shape = 'u32[]', space=smem, size = 0x4, offset = 0x4, fixed_abs, tag = 'smem constant byte address 0x4 - core index']
  #allocation1 [shape = 'u32[72,128]{1,0:T(1,128)}', space=vmem, size = 0x9000, scoped, tag = 'internal scratch']
  %s0 = inlined_call_operand.vmem [shape: f32[8,128], index: 0, kind: input, shape index: {}]
  %s1 = inlined_call_operand.hbm [shape: bf16[1280,128], index: 1, kind: input, shape index: {}]
  %s2 = inlined_call_operand.hbm [shape: f32[10,128], index: 2, kind: input, shape index: {}]
  %s3 = inlined_call_operand.vmem [shape: f32[8,128], index: 3, kind: output, shape index: {}]
  %s4 = sld [smem:[#allocation0]]
  $region30: #{fully_connected_forward.1} parent=0
    _
  %s6 = ssub.s32 1, %s4
  %s7 = scalar_select 0, %s6, %s4
  $region1: #{fully_connected_forward.1} parent=0
    #allocation2 [shape = 'u8[327680]{0}', space=vmem, size = 0x50000, scoped, tag = 'input window, operand 1, single buffered']
    #allocation3 [shape = 's32[1]{0}', space=sflag, size = 0x4, scoped, tag = 'scoped memory for fully_connected_forward.1']
    #allocation4 [shape = 'u8[8192]{0}', space=vmem, size = 0x2000, scoped, tag = 'input window, operand 2, single buffered']
    #allocation5 [shape = 's32[1]{0}', space=sflag, size = 0x4, scoped, tag = 'scoped memory for fully_connected_forward.1']
    %8 = vsyncpa [#allocation3], 0
    %9 = vsyncpa [#allocation5], 0
    // Predicated region
    $region2: #{fully_connected_forward.1} parent=1 // pred_check
      _
    $region3: #{fully_connected_forward.1} parent=1 // pred_check_branch
      %11 = sbr.rel (0) target = $region5
    $region4: #{fully_connected_forward.1} parent=1 // pred_region
      _
    $region5: #{fully_connected_forward.1} parent=1 // pred_fallthru
      _
    // Predicated region
    $region6: #{fully_connected_forward.1} parent=1 // pred_check
      _
    $region7: #{fully_connected_forward.1} parent=1 // pred_check_branch
      %13 = sbr.rel (0) target = $region9
    $region8: #{fully_connected_forward.1} parent=1 // pred_region
      %15 = vsyncadd [#allocation3], 0
      %s16 = sshll.u32 %s1, 4
      %s17 = int_to_ptr.hbm [resolvable:$true] %s16
      %s18 = sshll.u32 [#allocation2], 4
      %s19 = int_to_ptr.vmem [resolvable:$true] %s18
      %24 = dma.hbm_to_vmem [thread:$0]  %s17, 10240, %s19, [#allocation3], 64, 64, 4
    $region9: #{fully_connected_forward.1} parent=1 // pred_fallthru
      _
    // Predicated region
    $region10: #{fully_connected_forward.1} parent=1 // pred_check
      _
    $region11: #{fully_connected_forward.1} parent=1 // pred_check_branch
      %26 = sbr.rel (0) target = $region13
    $region12: #{fully_connected_forward.1} parent=1 // pred_region
      %28 = vsyncadd [#allocation5], 0
      %s29 = sshll.u32 %s2, 4
      %s30 = int_to_ptr.hbm [resolvable:$true] %s29
      %s31 = sshll.u32 [#allocation4], 4
      %s32 = int_to_ptr.vmem [resolvable:$true] %s31
      %37 = dma.hbm_to_vmem [thread:$0]  %s30, 256, %s32, [#allocation5], 128, 128, 8
    $region13: #{fully_connected_forward.1} parent=1 // pred_fallthru
      _
    // Predicated region
    $region14: #{fully_connected_forward.1} parent=1 // pred_check
      _
    $region15: #{fully_connected_forward.1} parent=1 // pred_check_branch
      %39 = sbr.rel (0) target = $region17
    $region16: #{fully_connected_forward.1} parent=1 // pred_region
      %41 = dma.done [#allocation3], 10240
    $region17: #{fully_connected_forward.1} parent=1 // pred_fallthru
      _
    // Predicated region
    $region18: #{fully_connected_forward.1} parent=1 // pred_check
      _
    $region19: #{fully_connected_forward.1} parent=1 // pred_check_branch
      %43 = sbr.rel (0) target = $region21
    $region20: #{fully_connected_forward.1} parent=1 // pred_region
      %45 = dma.done [#allocation5], 256
    $region21: #{fully_connected_forward.1} parent=1 // pred_fallthru
      _
    %v46 = vld [vmem:[%s0] sm:$0xff]
    %v47 = vld [vmem:[#allocation2] sm:$0xf]
    %v48 = vld [vmem:[#allocation2 + $0x4] sm:$0xf]
    %v49 = vld [vmem:[#allocation2 + $0x8] sm:$0xf]
    %v50 = vld [vmem:[#allocation2 + $0xc] sm:$0xf]
    %v51 = vld [vmem:[#allocation2 + $0x10] sm:$0xf]
    %v52 = vld [vmem:[#allocation2 + $0x14] sm:$0xf]
    %v53 = vld [vmem:[#allocation2 + $0x18] sm:$0xf]
    %v54 = vld [vmem:[#allocation2 + $0x1c] sm:$0xf]
    %v55 = vld [vmem:[#allocation2 + $0x20] sm:$0xf]
    %v56 = vld [vmem:[#allocation2 + $0x24] sm:$0xf]
    %v57 = vld [vmem:[#allocation2 + $0x28] sm:$0xf]
    %v58 = vld [vmem:[#allocation2 + $0x2c] sm:$0xf]
    %v59 = vld [vmem:[#allocation2 + $0x30] sm:$0xf]
    %v60 = vld [vmem:[#allocation2 + $0x34] sm:$0xf]
    %v61 = vld [vmem:[#allocation2 + $0x38] sm:$0xf]
    %v62 = vld [vmem:[#allocation2 + $0x3c] sm:$0xf]
    %v63 = vld [vmem:[#allocation4] sm:$0x1]
    %v64 = vpack.c.bf16 %v46, %v46
    %v65 = vperm.slane %v63, 0
    %v82 = vunpack.c.l.b16 %v47
    %v83 = vunpack.c.l.b16 %v48
    %v84 = vunpack.c.l.b16 %v49
    %v85 = vunpack.c.l.b16 %v50
    %v86 = vunpack.c.l.b16 %v51
    %v87 = vunpack.c.l.b16 %v52
    %v88 = vunpack.c.l.b16 %v53
    %v89 = vunpack.c.l.b16 %v54
    %v90 = vunpack.c.l.b16 %v55
    %v91 = vunpack.c.l.b16 %v56
    %v92 = vunpack.c.l.b16 %v57
    %v93 = vunpack.c.l.b16 %v58
    %v94 = vunpack.c.l.b16 %v59
    %v95 = vunpack.c.l.b16 %v60
    %v96 = vunpack.c.l.b16 %v61
    %v97 = vunpack.c.l.b16 %v62
    %v98 = vpack.c.b16 %v83, %v82
    %v99 = vpack.c.b16 %v85, %v84
    %v100 = vpack.c.b16 %v87, %v86
    %v101 = vpack.c.b16 %v89, %v88
    %v102 = vpack.c.b16 %v91, %v90
    %v103 = vpack.c.b16 %v93, %v92
    %v104 = vpack.c.b16 %v95, %v94
    %v105 = vpack.c.b16 %v97, %v96
    %114 = vmatpush.bf16.msra.mxu0 %v105
    %115 = vmatpush.bf16.msra.mxu0 %v104
    %116 = vmatpush.bf16.msra.mxu0 %v103
    %117 = vmatpush.bf16.msra.mxu0 %v102
    %118 = vmatpush.bf16.msra.mxu0 %v101
    %119 = vmatpush.bf16.msra.mxu0 %v100
    %120 = vmatpush.bf16.msra.mxu0 %v99
    %121 = vmatpush.bf16.msra.mxu0 %v98
    %122 = vmatmul.bf16.gmra.mxu0 %v64
    %v123 = vpop.f32.mrf.mxu0
    %v124 = vadd.f32 %v65, %v123
    %v125 = vpop.f32.mrf.mxu0
    %126 = vdwg.mxu0
    %v127 = vmax.f32 %v124, 0.0
    %v128 = vld [vmem:[#allocation2 + $0x40] sm:$0xf]
    %v129 = vld [vmem:[#allocation2 + $0x44] sm:$0xf]
    %v130 = vld [vmem:[#allocation2 + $0x48] sm:$0xf]
    %v131 = vld [vmem:[#allocation2 + $0x4c] sm:$0xf]
    %v132 = vld [vmem:[#allocation2 + $0x50] sm:$0xf]
    %v133 = vld [vmem:[#allocation2 + $0x54] sm:$0xf]
    %v134 = vld [vmem:[#allocation2 + $0x58] sm:$0xf]
    %v135 = vld [vmem:[#allocation2 + $0x5c] sm:$0xf]
    %v136 = vld [vmem:[#allocation2 + $0x60] sm:$0xf]
    %v137 = vld [vmem:[#allocation2 + $0x64] sm:$0xf]
    %v138 = vld [vmem:[#allocation2 + $0x68] sm:$0xf]
    %v139 = vld [vmem:[#allocation2 + $0x6c] sm:$0xf]
    %v140 = vld [vmem:[#allocation2 + $0x70] sm:$0xf]
    %v141 = vld [vmem:[#allocation2 + $0x74] sm:$0xf]
    %v142 = vld [vmem:[#allocation2 + $0x78] sm:$0xf]
    %v143 = vld [vmem:[#allocation2 + $0x7c] sm:$0xf]
    %v144 = vld [vmem:[#allocation4 + $0x1] sm:$0x1]
    %v145 = vpack.c.bf16 %v127, %v127
    %v146 = vperm.slane %v144, 0
    %v163 = vunpack.c.l.b16 %v128
    %v164 = vunpack.c.l.b16 %v129
    %v165 = vunpack.c.l.b16 %v130
    %v166 = vunpack.c.l.b16 %v131
    %v167 = vunpack.c.l.b16 %v132
    %v168 = vunpack.c.l.b16 %v133
    %v169 = vunpack.c.l.b16 %v134
    %v170 = vunpack.c.l.b16 %v135
    %v171 = vunpack.c.l.b16 %v136
    %v172 = vunpack.c.l.b16 %v137
    %v173 = vunpack.c.l.b16 %v138
    %v174 = vunpack.c.l.b16 %v139
    %v175 = vunpack.c.l.b16 %v140
    %v176 = vunpack.c.l.b16 %v141
    %v177 = vunpack.c.l.b16 %v142
    %v178 = vunpack.c.l.b16 %v143
    %v179 = vpack.c.b16 %v164, %v163
    %v180 = vpack.c.b16 %v166, %v165
    %v181 = vpack.c.b16 %v168, %v167
    %v182 = vpack.c.b16 %v170, %v169
    %v183 = vpack.c.b16 %v172, %v171
    %v184 = vpack.c.b16 %v174, %v173
    %v185 = vpack.c.b16 %v176, %v175
    %v186 = vpack.c.b16 %v178, %v177
    %195 = vmatpush.bf16.msra.mxu0 %v186
    %196 = vmatpush.bf16.msra.mxu0 %v185
    %197 = vmatpush.bf16.msra.mxu0 %v184
    %198 = vmatpush.bf16.msra.mxu0 %v183
    %199 = vmatpush.bf16.msra.mxu0 %v182
    %200 = vmatpush.bf16.msra.mxu0 %v181
    %201 = vmatpush.bf16.msra.mxu0 %v180
    %202 = vmatpush.bf16.msra.mxu0 %v179
    %203 = vmatmul.bf16.gmra.mxu0 %v145
    %v204 = vpop.f32.mrf.mxu0
    %v205 = vadd.f32 %v146, %v204
    %v206 = vpop.f32.mrf.mxu0
    %207 = vdwg.mxu0
    %v208 = vmax.f32 %v205, 0.0
    %v209 = vld [vmem:[#allocation2 + $0x80] sm:$0xf]
    %v210 = vld [vmem:[#allocation2 + $0x84] sm:$0xf]
    %v211 = vld [vmem:[#allocation2 + $0x88] sm:$0xf]
    %v212 = vld [vmem:[#allocation2 + $0x8c] sm:$0xf]
    %v213 = vld [vmem:[#allocation2 + $0x90] sm:$0xf]
    %v214 = vld [vmem:[#allocation2 + $0x94] sm:$0xf]
    %v215 = vld [vmem:[#allocation2 + $0x98] sm:$0xf]
    %v216 = vld [vmem:[#allocation2 + $0x9c] sm:$0xf]
    %v217 = vld [vmem:[#allocation2 + $0xa0] sm:$0xf]
    %v218 = vld [vmem:[#allocation2 + $0xa4] sm:$0xf]
    %v219 = vld [vmem:[#allocation2 + $0xa8] sm:$0xf]
    %v220 = vld [vmem:[#allocation2 + $0xac] sm:$0xf]
    %v221 = vld [vmem:[#allocation2 + $0xb0] sm:$0xf]
    %v222 = vld [vmem:[#allocation2 + $0xb4] sm:$0xf]
    %v223 = vld [vmem:[#allocation2 + $0xb8] sm:$0xf]
    %v224 = vld [vmem:[#allocation2 + $0xbc] sm:$0xf]
    %v225 = vld [vmem:[#allocation4 + $0x2] sm:$0x1]
    %v226 = vpack.c.bf16 %v208, %v208
    %v227 = vperm.slane %v225, 0
    %v244 = vunpack.c.l.b16 %v209
    %v245 = vunpack.c.l.b16 %v210
    %v246 = vunpack.c.l.b16 %v211
    %v247 = vunpack.c.l.b16 %v212
    %v248 = vunpack.c.l.b16 %v213
    %v249 = vunpack.c.l.b16 %v214
    %v250 = vunpack.c.l.b16 %v215
    %v251 = vunpack.c.l.b16 %v216
    %v252 = vunpack.c.l.b16 %v217
    %v253 = vunpack.c.l.b16 %v218
    %v254 = vunpack.c.l.b16 %v219
    %v255 = vunpack.c.l.b16 %v220
    %v256 = vunpack.c.l.b16 %v221
    %v257 = vunpack.c.l.b16 %v222
    %v258 = vunpack.c.l.b16 %v223
    %v259 = vunpack.c.l.b16 %v224
    %v260 = vpack.c.b16 %v245, %v244
    %v261 = vpack.c.b16 %v247, %v246
    %v262 = vpack.c.b16 %v249, %v248
    %v263 = vpack.c.b16 %v251, %v250
    %v264 = vpack.c.b16 %v253, %v252
    %v265 = vpack.c.b16 %v255, %v254
    %v266 = vpack.c.b16 %v257, %v256
    %v267 = vpack.c.b16 %v259, %v258
    %276 = vmatpush.bf16.msra.mxu0 %v267
    %277 = vmatpush.bf16.msra.mxu0 %v266
    %278 = vmatpush.bf16.msra.mxu0 %v265
    %279 = vmatpush.bf16.msra.mxu0 %v264
    %280 = vmatpush.bf16.msra.mxu0 %v263
    %281 = vmatpush.bf16.msra.mxu0 %v262
    %282 = vmatpush.bf16.msra.mxu0 %v261
    %283 = vmatpush.bf16.msra.mxu0 %v260
    %284 = vmatmul.bf16.gmra.mxu0 %v226
    %v285 = vpop.f32.mrf.mxu0
    %v286 = vadd.f32 %v227, %v285
    %v287 = vpop.f32.mrf.mxu0
    %288 = vdwg.mxu0
    %v289 = vmax.f32 %v286, 0.0
    %v290 = vld [vmem:[#allocation2 + $0xc0] sm:$0xf]
    %v291 = vld [vmem:[#allocation2 + $0xc4] sm:$0xf]
    %v292 = vld [vmem:[#allocation2 + $0xc8] sm:$0xf]
    %v293 = vld [vmem:[#allocation2 + $0xcc] sm:$0xf]
    %v294 = vld [vmem:[#allocation2 + $0xd0] sm:$0xf]
    %v295 = vld [vmem:[#allocation2 + $0xd4] sm:$0xf]
    %v296 = vld [vmem:[#allocation2 + $0xd8] sm:$0xf]
    %v297 = vld [vmem:[#allocation2 + $0xdc] sm:$0xf]
    %v298 = vld [vmem:[#allocation2 + $0xe0] sm:$0xf]
    %v299 = vld [vmem:[#allocation2 + $0xe4] sm:$0xf]
    %v300 = vld [vmem:[#allocation2 + $0xe8] sm:$0xf]
    %v301 = vld [vmem:[#allocation2 + $0xec] sm:$0xf]
    %v302 = vld [vmem:[#allocation2 + $0xf0] sm:$0xf]
    %v303 = vld [vmem:[#allocation2 + $0xf4] sm:$0xf]
    %v304 = vld [vmem:[#allocation2 + $0xf8] sm:$0xf]
    %v305 = vld [vmem:[#allocation2 + $0xfc] sm:$0xf]
    %v306 = vld [vmem:[#allocation4 + $0x3] sm:$0x1]
    %v307 = vpack.c.bf16 %v289, %v289
    %v308 = vperm.slane %v306, 0
    %v325 = vunpack.c.l.b16 %v290
    %v326 = vunpack.c.l.b16 %v291
    %v327 = vunpack.c.l.b16 %v292
    %v328 = vunpack.c.l.b16 %v293
    %v329 = vunpack.c.l.b16 %v294
    %v330 = vunpack.c.l.b16 %v295
    %v331 = vunpack.c.l.b16 %v296
    %v332 = vunpack.c.l.b16 %v297
    %v333 = vunpack.c.l.b16 %v298
    %v334 = vunpack.c.l.b16 %v299
    %v335 = vunpack.c.l.b16 %v300
    %v336 = vunpack.c.l.b16 %v301
    %v337 = vunpack.c.l.b16 %v302
    %v338 = vunpack.c.l.b16 %v303
    %v339 = vunpack.c.l.b16 %v304
    %v340 = vunpack.c.l.b16 %v305
    %v341 = vpack.c.b16 %v326, %v325
    %v342 = vpack.c.b16 %v328, %v327
    %v343 = vpack.c.b16 %v330, %v329
    %v344 = vpack.c.b16 %v332, %v331
    %v345 = vpack.c.b16 %v334, %v333
    %v346 = vpack.c.b16 %v336, %v335
    %v347 = vpack.c.b16 %v338, %v337
    %v348 = vpack.c.b16 %v340, %v339
    %357 = vmatpush.bf16.msra.mxu0 %v348
    %358 = vmatpush.bf16.msra.mxu0 %v347
    %359 = vmatpush.bf16.msra.mxu0 %v346
    %360 = vmatpush.bf16.msra.mxu0 %v345
    %361 = vmatpush.bf16.msra.mxu0 %v344
    %362 = vmatpush.bf16.msra.mxu0 %v343
    %363 = vmatpush.bf16.msra.mxu0 %v342
    %364 = vmatpush.bf16.msra.mxu0 %v341
    %365 = vmatmul.bf16.gmra.mxu0 %v307
    %v366 = vpop.f32.mrf.mxu0
    %v367 = vadd.f32 %v308, %v366
    %v368 = vpop.f32.mrf.mxu0
    %369 = vdwg.mxu0
    %v370 = vmax.f32 %v367, 0.0
    %v371 = vld [vmem:[#allocation2 + $0x100] sm:$0xf]
    %v372 = vld [vmem:[#allocation2 + $0x104] sm:$0xf]
    %v373 = vld [vmem:[#allocation2 + $0x108] sm:$0xf]
    %v374 = vld [vmem:[#allocation2 + $0x10c] sm:$0xf]
    %v375 = vld [vmem:[#allocation2 + $0x110] sm:$0xf]
    %v376 = vld [vmem:[#allocation2 + $0x114] sm:$0xf]
    %v377 = vld [vmem:[#allocation2 + $0x118] sm:$0xf]
    %v378 = vld [vmem:[#allocation2 + $0x11c] sm:$0xf]
    %v379 = vld [vmem:[#allocation2 + $0x120] sm:$0xf]
    %v380 = vld [vmem:[#allocation2 + $0x124] sm:$0xf]
    %v381 = vld [vmem:[#allocation2 + $0x128] sm:$0xf]
    %v382 = vld [vmem:[#allocation2 + $0x12c] sm:$0xf]
    %v383 = vld [vmem:[#allocation2 + $0x130] sm:$0xf]
    %v384 = vld [vmem:[#allocation2 + $0x134] sm:$0xf]
    %v385 = vld [vmem:[#allocation2 + $0x138] sm:$0xf]
    %v386 = vld [vmem:[#allocation2 + $0x13c] sm:$0xf]
    %v387 = vld [vmem:[#allocation4 + $0x4] sm:$0x1]
    %v388 = vpack.c.bf16 %v370, %v370
    %v389 = vperm.slane %v387, 0
    %v406 = vunpack.c.l.b16 %v371
    %v407 = vunpack.c.l.b16 %v372
    %v408 = vunpack.c.l.b16 %v373
    %v409 = vunpack.c.l.b16 %v374
    %v410 = vunpack.c.l.b16 %v375
    %v411 = vunpack.c.l.b16 %v376
    %v412 = vunpack.c.l.b16 %v377
    %v413 = vunpack.c.l.b16 %v378
    %v414 = vunpack.c.l.b16 %v379
    %v415 = vunpack.c.l.b16 %v380
    %v416 = vunpack.c.l.b16 %v381
    %v417 = vunpack.c.l.b16 %v382
    %v418 = vunpack.c.l.b16 %v383
    %v419 = vunpack.c.l.b16 %v384
    %v420 = vunpack.c.l.b16 %v385
    %v421 = vunpack.c.l.b16 %v386
    %v422 = vpack.c.b16 %v407, %v406
    %v423 = vpack.c.b16 %v409, %v408
    %v424 = vpack.c.b16 %v411, %v410
    %v425 = vpack.c.b16 %v413, %v412
    %v426 = vpack.c.b16 %v415, %v414
    %v427 = vpack.c.b16 %v417, %v416
    %v428 = vpack.c.b16 %v419, %v418
    %v429 = vpack.c.b16 %v421, %v420
    %438 = vmatpush.bf16.msra.mxu0 %v429
    %439 = vmatpush.bf16.msra.mxu0 %v428
    %440 = vmatpush.bf16.msra.mxu0 %v427
    %441 = vmatpush.bf16.msra.mxu0 %v426
    %442 = vmatpush.bf16.msra.mxu0 %v425
    %443 = vmatpush.bf16.msra.mxu0 %v424
    %444 = vmatpush.bf16.msra.mxu0 %v423
    %445 = vmatpush.bf16.msra.mxu0 %v422
    %446 = vmatmul.bf16.gmra.mxu0 %v388
    %v447 = vpop.f32.mrf.mxu0
    %v448 = vadd.f32 %v389, %v447
    %v449 = vpop.f32.mrf.mxu0
    %450 = vdwg.mxu0
    %v451 = vmax.f32 %v448, 0.0
    %v452 = vld [vmem:[#allocation2 + $0x140] sm:$0xf]
    %v453 = vld [vmem:[#allocation2 + $0x144] sm:$0xf]
    %v454 = vld [vmem:[#allocation2 + $0x148] sm:$0xf]
    %v455 = vld [vmem:[#allocation2 + $0x14c] sm:$0xf]
    %v456 = vld [vmem:[#allocation2 + $0x150] sm:$0xf]
    %v457 = vld [vmem:[#allocation2 + $0x154] sm:$0xf]
    %v458 = vld [vmem:[#allocation2 + $0x158] sm:$0xf]
    %v459 = vld [vmem:[#allocation2 + $0x15c] sm:$0xf]
    %v460 = vld [vmem:[#allocation2 + $0x160] sm:$0xf]
    %v461 = vld [vmem:[#allocation2 + $0x164] sm:$0xf]
    %v462 = vld [vmem:[#allocation2 + $0x168] sm:$0xf]
    %v463 = vld [vmem:[#allocation2 + $0x16c] sm:$0xf]
    %v464 = vld [vmem:[#allocation2 + $0x170] sm:$0xf]
    %v465 = vld [vmem:[#allocation2 + $0x174] sm:$0xf]
    %v466 = vld [vmem:[#allocation2 + $0x178] sm:$0xf]
    %v467 = vld [vmem:[#allocation2 + $0x17c] sm:$0xf]
    %v468 = vld [vmem:[#allocation4 + $0x5] sm:$0x1]
    %v469 = vpack.c.bf16 %v451, %v451
    %v470 = vperm.slane %v468, 0
    %v487 = vunpack.c.l.b16 %v452
    %v488 = vunpack.c.l.b16 %v453
    %v489 = vunpack.c.l.b16 %v454
    %v490 = vunpack.c.l.b16 %v455
    %v491 = vunpack.c.l.b16 %v456
    %v492 = vunpack.c.l.b16 %v457
    %v493 = vunpack.c.l.b16 %v458
    %v494 = vunpack.c.l.b16 %v459
    %v495 = vunpack.c.l.b16 %v460
    %v496 = vunpack.c.l.b16 %v461
    %v497 = vunpack.c.l.b16 %v462
    %v498 = vunpack.c.l.b16 %v463
    %v499 = vunpack.c.l.b16 %v464
    %v500 = vunpack.c.l.b16 %v465
    %v501 = vunpack.c.l.b16 %v466
    %v502 = vunpack.c.l.b16 %v467
    %v503 = vpack.c.b16 %v488, %v487
    %v504 = vpack.c.b16 %v490, %v489
    %v505 = vpack.c.b16 %v492, %v491
    %v506 = vpack.c.b16 %v494, %v493
    %v507 = vpack.c.b16 %v496, %v495
    %v508 = vpack.c.b16 %v498, %v497
    %v509 = vpack.c.b16 %v500, %v499
    %v510 = vpack.c.b16 %v502, %v501
    %519 = vmatpush.bf16.msra.mxu0 %v510
    %520 = vmatpush.bf16.msra.mxu0 %v509
    %521 = vmatpush.bf16.msra.mxu0 %v508
    %522 = vmatpush.bf16.msra.mxu0 %v507
    %523 = vmatpush.bf16.msra.mxu0 %v506
    %524 = vmatpush.bf16.msra.mxu0 %v505
    %525 = vmatpush.bf16.msra.mxu0 %v504
    %526 = vmatpush.bf16.msra.mxu0 %v503
    %527 = vmatmul.bf16.gmra.mxu0 %v469
    %v528 = vpop.f32.mrf.mxu0
    %v529 = vadd.f32 %v470, %v528
    %v530 = vpop.f32.mrf.mxu0
    %531 = vdwg.mxu0
    %v532 = vmax.f32 %v529, 0.0
    %v533 = vld [vmem:[#allocation2 + $0x180] sm:$0xf]
    %v534 = vld [vmem:[#allocation2 + $0x184] sm:$0xf]
    %v535 = vld [vmem:[#allocation2 + $0x188] sm:$0xf]
    %v536 = vld [vmem:[#allocation2 + $0x18c] sm:$0xf]
    %v537 = vld [vmem:[#allocation2 + $0x190] sm:$0xf]
    %v538 = vld [vmem:[#allocation2 + $0x194] sm:$0xf]
    %v539 = vld [vmem:[#allocation2 + $0x198] sm:$0xf]
    %v540 = vld [vmem:[#allocation2 + $0x19c] sm:$0xf]
    %v541 = vld [vmem:[#allocation2 + $0x1a0] sm:$0xf]
    %v542 = vld [vmem:[#allocation2 + $0x1a4] sm:$0xf]
    %v543 = vld [vmem:[#allocation2 + $0x1a8] sm:$0xf]
    %v544 = vld [vmem:[#allocation2 + $0x1ac] sm:$0xf]
    %v545 = vld [vmem:[#allocation2 + $0x1b0] sm:$0xf]
    %v546 = vld [vmem:[#allocation2 + $0x1b4] sm:$0xf]
    %v547 = vld [vmem:[#allocation2 + $0x1b8] sm:$0xf]
    %v548 = vld [vmem:[#allocation2 + $0x1bc] sm:$0xf]
    %v549 = vld [vmem:[#allocation4 + $0x6] sm:$0x1]
    %v550 = vpack.c.bf16 %v532, %v532
    %v551 = vperm.slane %v549, 0
    %v568 = vunpack.c.l.b16 %v533
    %v569 = vunpack.c.l.b16 %v534
    %v570 = vunpack.c.l.b16 %v535
    %v571 = vunpack.c.l.b16 %v536
    %v572 = vunpack.c.l.b16 %v537
    %v573 = vunpack.c.l.b16 %v538
    %v574 = vunpack.c.l.b16 %v539
    %v575 = vunpack.c.l.b16 %v540
    %v576 = vunpack.c.l.b16 %v541
    %v577 = vunpack.c.l.b16 %v542
    %v578 = vunpack.c.l.b16 %v543
    %v579 = vunpack.c.l.b16 %v544
    %v580 = vunpack.c.l.b16 %v545
    %v581 = vunpack.c.l.b16 %v546
    %v582 = vunpack.c.l.b16 %v547
    %v583 = vunpack.c.l.b16 %v548
    %v584 = vpack.c.b16 %v569, %v568
    %v585 = vpack.c.b16 %v571, %v570
    %v586 = vpack.c.b16 %v573, %v572
    %v587 = vpack.c.b16 %v575, %v574
    %v588 = vpack.c.b16 %v577, %v576
    %v589 = vpack.c.b16 %v579, %v578
    %v590 = vpack.c.b16 %v581, %v580
    %v591 = vpack.c.b16 %v583, %v582
    %600 = vmatpush.bf16.msra.mxu0 %v591
    %601 = vmatpush.bf16.msra.mxu0 %v590
    %602 = vmatpush.bf16.msra.mxu0 %v589
    %603 = vmatpush.bf16.msra.mxu0 %v588
    %604 = vmatpush.bf16.msra.mxu0 %v587
    %605 = vmatpush.bf16.msra.mxu0 %v586
    %606 = vmatpush.bf16.msra.mxu0 %v585
    %607 = vmatpush.bf16.msra.mxu0 %v584
    %608 = vmatmul.bf16.gmra.mxu0 %v550
    %v609 = vpop.f32.mrf.mxu0
    %v610 = vadd.f32 %v551, %v609
    %v611 = vpop.f32.mrf.mxu0
    %612 = vdwg.mxu0
    %v613 = vmax.f32 %v610, 0.0
    %v614 = vld [vmem:[#allocation2 + $0x1c0] sm:$0xf]
    %v615 = vld [vmem:[#allocation2 + $0x1c4] sm:$0xf]
    %v616 = vld [vmem:[#allocation2 + $0x1c8] sm:$0xf]
    %v617 = vld [vmem:[#allocation2 + $0x1cc] sm:$0xf]
    %v618 = vld [vmem:[#allocation2 + $0x1d0] sm:$0xf]
    %v619 = vld [vmem:[#allocation2 + $0x1d4] sm:$0xf]
    %v620 = vld [vmem:[#allocation2 + $0x1d8] sm:$0xf]
    %v621 = vld [vmem:[#allocation2 + $0x1dc] sm:$0xf]
    %v622 = vld [vmem:[#allocation2 + $0x1e0] sm:$0xf]
    %v623 = vld [vmem:[#allocation2 + $0x1e4] sm:$0xf]
    %v624 = vld [vmem:[#allocation2 + $0x1e8] sm:$0xf]
    %v625 = vld [vmem:[#allocation2 + $0x1ec] sm:$0xf]
    %v626 = vld [vmem:[#allocation2 + $0x1f0] sm:$0xf]
    %v627 = vld [vmem:[#allocation2 + $0x1f4] sm:$0xf]
    %v628 = vld [vmem:[#allocation2 + $0x1f8] sm:$0xf]
    %v629 = vld [vmem:[#allocation2 + $0x1fc] sm:$0xf]
    %v630 = vld [vmem:[#allocation4 + $0x7] sm:$0x1]
    %v631 = vpack.c.bf16 %v613, %v613
    %v632 = vperm.slane %v630, 0
    %v649 = vunpack.c.l.b16 %v614
    %v650 = vunpack.c.l.b16 %v615
    %v651 = vunpack.c.l.b16 %v616
    %v652 = vunpack.c.l.b16 %v617
    %v653 = vunpack.c.l.b16 %v618
    %v654 = vunpack.c.l.b16 %v619
    %v655 = vunpack.c.l.b16 %v620
    %v656 = vunpack.c.l.b16 %v621
    %v657 = vunpack.c.l.b16 %v622
    %v658 = vunpack.c.l.b16 %v623
    %v659 = vunpack.c.l.b16 %v624
    %v660 = vunpack.c.l.b16 %v625
    %v661 = vunpack.c.l.b16 %v626
    %v662 = vunpack.c.l.b16 %v627
    %v663 = vunpack.c.l.b16 %v628
    %v664 = vunpack.c.l.b16 %v629
    %v665 = vpack.c.b16 %v650, %v649
    %v666 = vpack.c.b16 %v652, %v651
    %v667 = vpack.c.b16 %v654, %v653
    %v668 = vpack.c.b16 %v656, %v655
    %v669 = vpack.c.b16 %v658, %v657
    %v670 = vpack.c.b16 %v660, %v659
    %v671 = vpack.c.b16 %v662, %v661
    %v672 = vpack.c.b16 %v664, %v663
    %681 = vmatpush.bf16.msra.mxu0 %v672
    %682 = vmatpush.bf16.msra.mxu0 %v671
    %683 = vmatpush.bf16.msra.mxu0 %v670
    %684 = vmatpush.bf16.msra.mxu0 %v669
    %685 = vmatpush.bf16.msra.mxu0 %v668
    %686 = vmatpush.bf16.msra.mxu0 %v667
    %687 = vmatpush.bf16.msra.mxu0 %v666
    %688 = vmatpush.bf16.msra.mxu0 %v665
    %689 = vmatmul.bf16.gmra.mxu0 %v631
    %v690 = vpop.f32.mrf.mxu0
    %v691 = vadd.f32 %v632, %v690
    %v692 = vpop.f32.mrf.mxu0
    %693 = vdwg.mxu0
    %v694 = vmax.f32 %v691, 0.0
    %v695 = vld [vmem:[#allocation2 + $0x200] sm:$0xf]
    %v696 = vld [vmem:[#allocation2 + $0x204] sm:$0xf]
    %v697 = vld [vmem:[#allocation2 + $0x208] sm:$0xf]
    %v698 = vld [vmem:[#allocation2 + $0x20c] sm:$0xf]
    %v699 = vld [vmem:[#allocation2 + $0x210] sm:$0xf]
    %v700 = vld [vmem:[#allocation2 + $0x214] sm:$0xf]
    %v701 = vld [vmem:[#allocation2 + $0x218] sm:$0xf]
    %v702 = vld [vmem:[#allocation2 + $0x21c] sm:$0xf]
    %v703 = vld [vmem:[#allocation2 + $0x220] sm:$0xf]
    %v704 = vld [vmem:[#allocation2 + $0x224] sm:$0xf]
    %v705 = vld [vmem:[#allocation2 + $0x228] sm:$0xf]
    %v706 = vld [vmem:[#allocation2 + $0x22c] sm:$0xf]
    %v707 = vld [vmem:[#allocation2 + $0x230] sm:$0xf]
    %v708 = vld [vmem:[#allocation2 + $0x234] sm:$0xf]
    %v709 = vld [vmem:[#allocation2 + $0x238] sm:$0xf]
    %v710 = vld [vmem:[#allocation2 + $0x23c] sm:$0xf]
    %v711 = vld [vmem:[#allocation4 + $0x8] sm:$0x1]
    %v712 = vpack.c.bf16 %v694, %v694
    %v713 = vperm.slane %v711, 0
    %v730 = vunpack.c.l.b16 %v695
    %v731 = vunpack.c.l.b16 %v696
    %v732 = vunpack.c.l.b16 %v697
    %v733 = vunpack.c.l.b16 %v698
    %v734 = vunpack.c.l.b16 %v699
    %v735 = vunpack.c.l.b16 %v700
    %v736 = vunpack.c.l.b16 %v701
    %v737 = vunpack.c.l.b16 %v702
    %v738 = vunpack.c.l.b16 %v703
    %v739 = vunpack.c.l.b16 %v704
    %v740 = vunpack.c.l.b16 %v705
    %v741 = vunpack.c.l.b16 %v706
    %v742 = vunpack.c.l.b16 %v707
    %v743 = vunpack.c.l.b16 %v708
    %v744 = vunpack.c.l.b16 %v709
    %v745 = vunpack.c.l.b16 %v710
    %v746 = vpack.c.b16 %v731, %v730
    %v747 = vpack.c.b16 %v733, %v732
    %v748 = vpack.c.b16 %v735, %v734
    %v749 = vpack.c.b16 %v737, %v736
    %v750 = vpack.c.b16 %v739, %v738
    %v751 = vpack.c.b16 %v741, %v740
    %v752 = vpack.c.b16 %v743, %v742
    %v753 = vpack.c.b16 %v745, %v744
    %762 = vmatpush.bf16.msra.mxu0 %v753
    %763 = vmatpush.bf16.msra.mxu0 %v752
    %764 = vmatpush.bf16.msra.mxu0 %v751
    %765 = vmatpush.bf16.msra.mxu0 %v750
    %766 = vmatpush.bf16.msra.mxu0 %v749
    %767 = vmatpush.bf16.msra.mxu0 %v748
    %768 = vmatpush.bf16.msra.mxu0 %v747
    %769 = vmatpush.bf16.msra.mxu0 %v746
    %770 = vmatmul.bf16.gmra.mxu0 %v712
    %v771 = vpop.f32.mrf.mxu0
    %v772 = vadd.f32 %v713, %v771
    %v773 = vpop.f32.mrf.mxu0
    %774 = vdwg.mxu0
    %v775 = vmax.f32 %v772, 0.0
    %v776 = vld [vmem:[#allocation2 + $0x240] sm:$0xf]
    %v777 = vld [vmem:[#allocation2 + $0x244] sm:$0xf]
    %v778 = vld [vmem:[#allocation2 + $0x248] sm:$0xf]
    %v779 = vld [vmem:[#allocation2 + $0x24c] sm:$0xf]
    %v780 = vld [vmem:[#allocation2 + $0x250] sm:$0xf]
    %v781 = vld [vmem:[#allocation2 + $0x254] sm:$0xf]
    %v782 = vld [vmem:[#allocation2 + $0x258] sm:$0xf]
    %v783 = vld [vmem:[#allocation2 + $0x25c] sm:$0xf]
    %v784 = vld [vmem:[#allocation2 + $0x260] sm:$0xf]
    %v785 = vld [vmem:[#allocation2 + $0x264] sm:$0xf]
    %v786 = vld [vmem:[#allocation2 + $0x268] sm:$0xf]
    %v787 = vld [vmem:[#allocation2 + $0x26c] sm:$0xf]
    %v788 = vld [vmem:[#allocation2 + $0x270] sm:$0xf]
    %v789 = vld [vmem:[#allocation2 + $0x274] sm:$0xf]
    %v790 = vld [vmem:[#allocation2 + $0x278] sm:$0xf]
    %v791 = vld [vmem:[#allocation2 + $0x27c] sm:$0xf]
    %v792 = vld [vmem:[#allocation4 + $0x9] sm:$0x1]
    %v793 = vpack.c.bf16 %v775, %v775
    %v794 = vperm.slane %v792, 0
    %v811 = vunpack.c.l.b16 %v776
    %v812 = vunpack.c.l.b16 %v777
    %v813 = vunpack.c.l.b16 %v778
    %v814 = vunpack.c.l.b16 %v779
    %v815 = vunpack.c.l.b16 %v780
    %v816 = vunpack.c.l.b16 %v781
    %v817 = vunpack.c.l.b16 %v782
    %v818 = vunpack.c.l.b16 %v783
    %v819 = vunpack.c.l.b16 %v784
    %v820 = vunpack.c.l.b16 %v785
    %v821 = vunpack.c.l.b16 %v786
    %v822 = vunpack.c.l.b16 %v787
    %v823 = vunpack.c.l.b16 %v788
    %v824 = vunpack.c.l.b16 %v789
    %v825 = vunpack.c.l.b16 %v790
    %v826 = vunpack.c.l.b16 %v791
    %v827 = vpack.c.b16 %v812, %v811
    %v828 = vpack.c.b16 %v814, %v813
    %v829 = vpack.c.b16 %v816, %v815
    %v830 = vpack.c.b16 %v818, %v817
    %v831 = vpack.c.b16 %v820, %v819
    %v832 = vpack.c.b16 %v822, %v821
    %v833 = vpack.c.b16 %v824, %v823
    %v834 = vpack.c.b16 %v826, %v825
    %843 = vmatpush.bf16.msra.mxu0 %v834
    %844 = vmatpush.bf16.msra.mxu0 %v833
    %845 = vmatpush.bf16.msra.mxu0 %v832
    %846 = vmatpush.bf16.msra.mxu0 %v831
    %847 = vmatpush.bf16.msra.mxu0 %v830
    %848 = vmatpush.bf16.msra.mxu0 %v829
    %849 = vmatpush.bf16.msra.mxu0 %v828
    %850 = vmatpush.bf16.msra.mxu0 %v827
    %851 = vmatmul.bf16.gmra.mxu0 %v793
    %v852 = vpop.f32.mrf.mxu0
    %v853 = vadd.f32 %v794, %v852
    %v854 = vpop.f32.mrf.mxu0
    %855 = vdwg.mxu0
    %856 = vst [vmem:[%s3] sm:$0xff] %v853
    // Predicated region
    $region22: #{fully_connected_forward.1} parent=1 // pred_check
      _
    $region23: #{fully_connected_forward.1} parent=1 // pred_check_branch
      %858 = sbr.rel (0) target = $region25
    $region24: #{fully_connected_forward.1} parent=1 // pred_region
      _
    $region25: #{fully_connected_forward.1} parent=1 // pred_fallthru
      _
    // Predicated region
    $region26: #{fully_connected_forward.1} parent=1 // pred_check
      _
    $region27: #{fully_connected_forward.1} parent=1 // pred_check_branch
      %860 = sbr.rel (0) target = $region29
    $region28: #{fully_connected_forward.1} parent=1 // pred_region
      _
    $region29: #{fully_connected_forward.1} parent=1 // pred_fallthru
      _
    %861 = vsyncpa [#allocation3], 1
    %862 = vsyncpa [#allocation5], 1

</llo_original>
